<compile_context>
chip_gen: v7x
topology: tpu7x:2x2x1
jax: 0.10.0
libtpu: 0.0.40
codegen_flags: <defaults>
</compile_context>

<pallas_src>
import jax
import jax.numpy as jnp
from jax import lax
from jax.experimental import pallas as pl
from jax.experimental.pallas import tpu as pltpu

_EPS = 1e-12


def _normalized_linear_kernel(x_ref, w_ref, inv_x_ref, inv_w_ref, o_ref):
    # x_ref:     (tm, K)  raw input tile            (bf16 or f32)
    # w_ref:     (K, tn)  raw, pre-transposed W     (bf16 or f32)
    # inv_x_ref: (tm, 1)  precomputed 1/max(||x_i||, eps)   (f32)
    # inv_w_ref: (1, tn)  precomputed 1/max(||W_j||, eps)   (f32)
    # o_ref:     (tm, tn) output tile (f32)
    # TODO(synk): pass precision=lax.Precision.HIGHEST here if bit-exact f32
    # parity with a strict f32 reference is ever required (default TPU dot
    # precision decomposes f32 into bf16 MXU passes).
    acc = jnp.dot(x_ref[...], w_ref[...], preferred_element_type=jnp.float32)
    o_ref[...] = (acc * inv_x_ref[...] * inv_w_ref[...]).astype(o_ref.dtype)


def _round_up(v, m):
    return (v + m - 1) // m * m


def _vmem_capacity_bytes():
    try:
        info = pltpu.get_tpu_info()
        cap = getattr(info, "vmem_capacity_bytes", None)
        if cap:
            return int(cap)
    except Exception:
        pass
    return 64 * 1024 * 1024  # conservative fallback: v7x per-TensorCore VMEM


def normalized_linear(x, w, *, tm=None, tn=None, use_bf16=True):
    """x: (M, K), w: (N, K) -> (M, N) = normalize(x) @ normalize(w).T"""
    M, K = x.shape
    N, K2 = w.shape
    assert K == K2

    x_f32 = x.astype(jnp.float32)
    w_f32 = w.astype(jnp.float32)

    # One-off inverse row norms, f32, computed BEFORE any down-cast.
    # 1/max(||v||, eps) == rsqrt(max(sum(v^2), eps^2)).
    inv_x = lax.rsqrt(
        jnp.maximum(jnp.sum(x_f32 * x_f32, axis=1, keepdims=True), _EPS * _EPS))    # (M, 1)
    inv_w = lax.rsqrt(
        jnp.maximum(jnp.sum(w_f32 * w_f32, axis=1, keepdims=True), _EPS * _EPS)).T  # (1, N)

    op_dtype = jnp.bfloat16 if use_bf16 else jnp.float32
    in_elt = jnp.dtype(op_dtype).itemsize
    out_elt = 4
    sub = 16 if use_bf16 else 8  # sublane multiple for the operand dtype

    x_op = x_f32.astype(op_dtype)        # (M, K)
    w_op = w_f32.T.astype(op_dtype)      # (K, N): transpose fused with the cast (one-off)

    # ---- generation-aware tile selection -------------------------------
    vmem_cap = _vmem_capacity_bytes()
    vmem_ceiling = int(vmem_cap * 0.8)   # leave headroom for compiler-internal scratch
    budget = int(vmem_ceiling * 0.7)

    tm_t = 256 if tm is None else tm
    tn_t = 256 if tn is None else tn

    tm_eff = _round_up(M, sub) if M <= tm_t else tm_t
    tn_eff = _round_up(N, 128) if N <= tn_t else tn_t   # lane-dense output tiles

    def _need(tm_, tn_):
        # double-buffered input tiles + inv vectors + double-buffered output tile
        return (2 * (tm_ * K + tn_ * K) * in_elt
                + 2 * (tm_ + tn_) * 4
                + 2 * tm_ * tn_ * out_elt)

    while _need(tm_eff, tn_eff) > budget and max(tm_eff, tn_eff) > 128:
        if tm_eff >= tn_eff:
            tm_eff = max(128, tm_eff // 2)
        else:
            tn_eff = max(128, tn_eff // 2)
    # TODO(synk): if _need(128, 128) still exceeds the budget (very large K),
    # add a K grid axis ("arbitrary", last) with an f32 VMEM scratch accumulator
    # and pl.when init/finalize instead of keeping the full K resident.

    M_pad = _round_up(M, tm_eff)
    N_pad = _round_up(N, tn_eff)

    # Zero-pad to tile multiples. Padded x rows / W cols contribute exact zeros
    # (0 * inv = 0) and are sliced off at the end.
    # TODO(synk): replace the jnp.pad HBM round-trip with pl.cdiv grids and
    # masked trailing blocks once validated across all generations.
    if M_pad != M:
        x_op = jnp.pad(x_op, ((0, M_pad - M), (0, 0)))
        inv_x = jnp.pad(inv_x, ((0, M_pad - M), (0, 0)))
    if N_pad != N:
        w_op = jnp.pad(w_op, ((0, 0), (0, N_pad - N)))
        inv_w = jnp.pad(inv_w, ((0, 0), (0, N_pad - N)))

    gm = M_pad // tm_eff
    gn = N_pad // tn_eff

    # ---- grid order: stream the larger operand from HBM exactly once ----
    if N_pad >= M_pad:
        # W (usually the larger operand of a linear layer) varies only with the
        # OUTER grid axis -> each W block is DMA'd once; the smaller x tiles are
        # re-streamed gn times.
        grid = (gn, gm)
        x_spec = pl.BlockSpec((tm_eff, K), lambda j, i: (i, 0))
        w_spec = pl.BlockSpec((K, tn_eff), lambda j, i: (0, j))
        ix_spec = pl.BlockSpec((tm_eff, 1), lambda j, i: (i, 0))
        iw_spec = pl.BlockSpec((1, tn_eff), lambda j, i: (0, j))
        o_spec = pl.BlockSpec((tm_eff, tn_eff), lambda j, i: (i, j))
    else:
        # Activations dominate: keep x on the outer axis (loaded once), re-stream W.
        grid = (gm, gn)
        x_spec = pl.BlockSpec((tm_eff, K), lambda i, j: (i, 0))
        w_spec = pl.BlockSpec((K, tn_eff), lambda i, j: (0, j))
        ix_spec = pl.BlockSpec((tm_eff, 1), lambda i, j: (i, 0))
        iw_spec = pl.BlockSpec((1, tn_eff), lambda i, j: (0, j))
        o_spec = pl.BlockSpec((tm_eff, tn_eff), lambda i, j: (i, j))

    out = pl.pallas_call(
        _normalized_linear_kernel,
        out_shape=jax.ShapeDtypeStruct((M_pad, N_pad), jnp.float32),
        grid_spec=pltpu.PrefetchScalarGridSpec(
            num_scalar_prefetch=0,
            grid=grid,
            in_specs=[x_spec, w_spec, ix_spec, iw_spec],
            out_specs=o_spec,
        ),
        compiler_params=pltpu.CompilerParams(
            dimension_semantics=("parallel", "parallel"),
            vmem_limit_bytes=vmem_ceiling,
        ),
    )(x_op, w_op, inv_x, inv_w)

    if (M_pad, N_pad) != (M, N):
        out = out[:M, :N]
    return out


def _xavier_uniform(key, out_features, in_features):
    # nn.init.xavier_uniform_ with gain=1: bound = sqrt(6 / (fan_in + fan_out))
    bound = (6.0 / (in_features + out_features)) ** 0.5
    return jax.random.uniform(
        key, (out_features, in_features), dtype=jnp.float32,
        minval=-bound, maxval=bound,
    )


def _reference(x, w, eps=_EPS):
    xn = x / jnp.maximum(jnp.linalg.norm(x, axis=1, keepdims=True), eps)
    wn = w / jnp.maximum(jnp.linalg.norm(w, axis=1, keepdims=True), eps)
    return xn @ wn.T


if __name__ == "__main__":
    key = jax.random.PRNGKey(0)
    k_x, k_w, k_x2, k_w2, k_x3, k_w3 = jax.random.split(key, 6)

    # --- 1) small shapes matching the module's forward, f32 operand path ----
    batch, in_features, out_features = 16, 32, 16
    x = jax.random.normal(k_x, (batch, in_features), dtype=jnp.float32)
    W = _xavier_uniform(k_w, out_features, in_features)

    out_f32 = jax.block_until_ready(normalized_linear(x, W, use_bf16=False))
    expected = _reference(x, W)
    assert out_f32.shape == (batch, out_features)
    assert jnp.allclose(out_f32, expected, atol=1e-5, rtol=1e-5)

    # --- 2) same shapes, default bf16-streaming path (looser tolerance) -----
    out_bf16 = jax.block_until_ready(normalized_linear(x, W))
    assert out_bf16.shape == (batch, out_features)
    assert jnp.allclose(out_bf16, expected, atol=2e-2, rtol=2e-2)

    # --- 3) non-divisible shapes, N > M: W streamed once on the outer axis --
    M2, K2, N2 = 200, 48, 144
    x2 = jax.random.normal(k_x2, (M2, K2), dtype=jnp.float32)
    W2 = _xavier_uniform(k_w2, N2, K2)
    out2 = jax.block_until_ready(normalized_linear(x2, W2))
    assert out2.shape == (M2, N2)
    assert jnp.allclose(out2, _reference(x2, W2), atol=2e-2, rtol=2e-2)

    # --- 4) M > N: exercises the other grid order + multi-block M padding ---
    M3, K3, N3 = 300, 32, 64
    x3 = jax.random.normal(k_x3, (M3, K3), dtype=jnp.float32)
    W3 = _xavier_uniform(k_w3, N3, K3)
    out3 = jax.block_until_ready(normalized_linear(x3, W3))
    assert out3.shape == (M3, N3)
    assert jnp.allclose(out3, _reference(x3, W3), atol=2e-2, rtol=2e-2)

    print("KERNEL_OK")
</pallas_src>

<mosaic_0001>
module attributes {stable_mosaic.version = 11 : i64} {
  func.func @_normalized_linear_kernel(%arg0: i32, %arg1: i32, %arg2: memref<16x32xf32, #tpu.memory_space<vmem>>, %arg3: memref<32x128xf32, #tpu.memory_space<vmem>>, %arg4: memref<16x1xf32, #tpu.memory_space<vmem>>, %arg5: memref<1x128xf32, #tpu.memory_space<vmem>>, %arg6: memref<16x128xf32, #tpu.memory_space<vmem>>) attributes {dimension_semantics = [#tpu.dimension_semantics<parallel>, #tpu.dimension_semantics<parallel>], iteration_bounds = array<i64: 1, 1>, scalar_prefetch = 0 : i64, scratch_operands = 0 : i64, tpu.core_type = #tpu.core_type<tc>, window_params = [{transform_indices = @transform_0, window_bounds = array<i64: 16, 32>}, {transform_indices = @transform_1, window_bounds = array<i64: 32, 128>}, {transform_indices = @transform_2, window_bounds = array<i64: 16, 1>}, {transform_indices = @transform_3, window_bounds = array<i64: 1, 128>}, {transform_indices = @transform_4, window_bounds = array<i64: 16, 128>}]} {
    %c0 = arith.constant 0 : index
    %c0_0 = arith.constant 0 : index
    %0 = vector.load %arg2[%c0, %c0_0] : memref<16x32xf32, #tpu.memory_space<vmem>>, vector<16x32xf32>
    %c0_1 = arith.constant 0 : index
    %c0_2 = arith.constant 0 : index
    %1 = vector.load %arg3[%c0_1, %c0_2] : memref<32x128xf32, #tpu.memory_space<vmem>>, vector<32x128xf32>
    %cst = arith.constant dense<0.000000e+00> : vector<16x128xf32>
    %2 = tpu.matmul %0, %1, %cst {dimension_numbers = #tpu.dot_dimension_numbers<[1], [0], [0], [1], [0, 0, 1, 1], [], []>} : vector<16x32xf32>, vector<32x128xf32>, vector<16x128xf32> -> vector<16x128xf32>
    %c0_3 = arith.constant 0 : index
    %c0_4 = arith.constant 0 : index
    %3 = vector.load %arg4[%c0_3, %c0_4] : memref<16x1xf32, #tpu.memory_space<vmem>>, vector<16x1xf32>
    %4 = vector.broadcast %3 : vector<16x1xf32> to vector<16x128xf32>
    %5 = arith.mulf %2, %4 : vector<16x128xf32>
    %c0_5 = arith.constant 0 : index
    %c0_6 = arith.constant 0 : index
    %6 = vector.load %arg5[%c0_5, %c0_6] : memref<1x128xf32, #tpu.memory_space<vmem>>, vector<1x128xf32>
    %7 = vector.broadcast %6 : vector<1x128xf32> to vector<16x128xf32>
    %8 = arith.mulf %5, %7 : vector<16x128xf32>
    %c0_7 = arith.constant 0 : index
    %c0_8 = arith.constant 0 : index
    %9 = vector.load %arg6[%c0_7, %c0_8] : memref<16x128xf32, #tpu.memory_space<vmem>>, vector<16x128xf32>
    tpu.vector_store %arg6[%c0_7, %c0_8], %8 {strides = array<i32>} : memref<16x128xf32, #tpu.memory_space<vmem>>, vector<16x128xf32>,
    return
  }
  func.func @transform_0(%arg0: i32, %arg1: i32) -> (i32, i32) {
    %c0_i32 = arith.constant 0 : i32
    %c0_i32_0 = arith.constant 0 : i32
    return %arg1, %c0_i32 : i32, i32
  }
  func.func @transform_1(%arg0: i32, %arg1: i32) -> (i32, i32) {
    %c0_i32 = arith.constant 0 : i32
    %c0_i32_0 = arith.constant 0 : i32
    return %c0_i32, %arg0 : i32, i32
  }
  func.func @transform_2(%arg0: i32, %arg1: i32) -> (i32, i32) {
    %c0_i32 = arith.constant 0 : i32
    %c0_i32_0 = arith.constant 0 : i32
    return %arg1, %c0_i32 : i32, i32
  }
  func.func @transform_3(%arg0: i32, %arg1: i32) -> (i32, i32) {
    %c0_i32 = arith.constant 0 : i32
    %c0_i32_0 = arith.constant 0 : i32
    return %c0_i32, %arg0 : i32, i32
  }
  func.func @transform_4(%arg0: i32, %arg1: i32) -> (i32, i32) {
    %c0_i32 = arith.constant 0 : i32
    return %arg1, %arg0 : i32, i32
  }
}

</mosaic_0001>

<llo_original>
// kernel: tpu_custom_call.1
$region0: #{tpu_custom_call.1}
  #allocation0 [shape = 'u32[]', space=smem, size = 0x4, offset = 0x4, fixed_abs, tag = 'smem constant byte address 0x4 - core index']
  #allocation1 [shape = 'u32[144,128]{1,0:T(1,128)}', space=vmem, size = 0x12000, scoped, tag = 'internal scratch']
  %s0 = inlined_call_operand.vmem [shape: f32[16,32], index: 0, kind: input, shape index: {}]
  %s1 = inlined_call_operand.hbm [shape: f32[32,128], index: 1, kind: input, shape index: {}]
  %s2 = inlined_call_operand.vmem [shape: f32[16,1], index: 2, kind: input, shape index: {}]
  %s3 = inlined_call_operand.vmem [shape: f32[1,128], index: 3, kind: input, shape index: {}]
  %s4 = inlined_call_operand.hbm [shape: f32[16,128], index: 4, kind: output, shape index: {}]
  %s5 = sld [smem:[#allocation0]]
  $region30: #{tpu_custom_call.1} parent=0
    _
  %s7 = ssub.s32 1, %s5
  %s8 = scalar_select 0, %s7, %s5
  $region1: #{tpu_custom_call.1} parent=0
    #allocation2 [shape = 'u8[16384]{0}', space=vmem, size = 0x4000, scoped, tag = 'input window, operand 1, single buffered']
    #allocation3 [shape = 's32[1]{0}', space=sflag, size = 0x4, scoped, tag = 'scoped memory for tpu_custom_call.1']
    #allocation4 [shape = 's32[1]{0}', space=sflag, size = 0x4, scoped, tag = 'scoped memory for tpu_custom_call.1']
    #allocation5 [shape = 'u8[8192]{0}', space=vmem, size = 0x2000, scoped, tag = 'output window, operand 0, single buffered']
    %9 = vsyncpa [#allocation3], 0
    %10 = vsyncpa [#allocation4], 0
    // Predicated region
    $region2: #{tpu_custom_call.1} parent=1 // pred_check
      _
    $region3: #{tpu_custom_call.1} parent=1 // pred_check_branch
      %12 = sbr.rel (0) target = $region5
    $region4: #{tpu_custom_call.1} parent=1 // pred_region
      _
    $region5: #{tpu_custom_call.1} parent=1 // pred_fallthru
      _
    // Predicated region
    $region6: #{tpu_custom_call.1} parent=1 // pred_check
      _
    $region7: #{tpu_custom_call.1} parent=1 // pred_check_branch
      %14 = sbr.rel (0) target = $region9
    $region8: #{tpu_custom_call.1} parent=1 // pred_region
      %s16 = ssub.s32 512, 512
      %17 = vsyncadd [#allocation3], %s16
      %s18 = sshll.u32 [#allocation2], 4
      %s19 = int_to_ptr.vmem [resolvable:$true] %s18
      %24 = dma.hbm_to_vmem [thread:$0]  %s1, 512, %s19, [#allocation3], 128, 128, 8
    $region9: #{tpu_custom_call.1} parent=1 // pred_fallthru
      _
    // Predicated region
    $region10: #{tpu_custom_call.1} parent=1 // pred_check
      _
    $region11: #{tpu_custom_call.1} parent=1 // pred_check_branch
      %26 = sbr.rel (0) target = $region13
    $region12: #{tpu_custom_call.1} parent=1 // pred_region
      _
    $region13: #{tpu_custom_call.1} parent=1 // pred_fallthru
      _
    // Predicated region
    $region14: #{tpu_custom_call.1} parent=1 // pred_check
      _
    $region15: #{tpu_custom_call.1} parent=1 // pred_check_branch
      %28 = sbr.rel (0) target = $region17
    $region16: #{tpu_custom_call.1} parent=1 // pred_region
      _
    $region17: #{tpu_custom_call.1} parent=1 // pred_fallthru
      _
    // Predicated region
    $region18: #{tpu_custom_call.1} parent=1 // pred_check
      _
    $region19: #{tpu_custom_call.1} parent=1 // pred_check_branch
      %30 = sbr.rel (0) target = $region21
    $region20: #{tpu_custom_call.1} parent=1 // pred_region
      %31 = dma.done [#allocation3], 512
    $region21: #{tpu_custom_call.1} parent=1 // pred_fallthru
      _
    %v32 = vld [vmem:[%s0] sm:$0xff]
    %v33 = vld [vmem:[%s0 + $0x8] sm:$0xff]
    %v34 = vld [vmem:[#allocation2] sm:$0xff]
    %v35 = vld [vmem:[#allocation2 + $0x8] sm:$0xff]
    %v36 = vld [vmem:[#allocation2 + $0x10] sm:$0xff]
    %v37 = vld [vmem:[#allocation2 + $0x18] sm:$0xff]
    %vm38 = vcmask 261120
    %v40 = vsel %vm38, %v32, 0
    %v43 = vsel %vm38, %v33, 0
    %45 = vmatprep.subr.mxu0 0.0
    %46 = vmatpush1.msra.mxu0 %v34
    %47 = vmatprep.subr.mxu0 0.0
    %48 = vmatpush1.msra.mxu0 %v35
    %49 = vmatprep.subr.mxu0 0.0
    %50 = vmatpush1.msra.mxu0 %v36
    %51 = vmatprep.subr.mxu0 0.0
    %52 = vmatpush1.msra.mxu0 %v37
    %53 = vmatprep.subr.mxu0 0.0
    %54 = vmatpush1.msra.mxu0 0.0
    %55 = vmatprep.subr.mxu0 0.0
    %56 = vmatpush1.msra.mxu0 0.0
    %57 = vmatprep.subr.mxu0 0.0
    %58 = vmatpush1.msra.mxu0 0.0
    %59 = vmatprep.subr.mxu0 0.0
    %60 = vmatpush1.msra.mxu0 0.0
    %61 = vmatprep.subr.mxu0 0.0
    %62 = vmatpush1.msra.mxu0 0.0
    %63 = vmatprep.subr.mxu0 0.0
    %64 = vmatpush1.msra.mxu0 0.0
    %65 = vmatprep.subr.mxu0 0.0
    %66 = vmatpush1.msra.mxu0 0.0
    %67 = vmatprep.subr.mxu0 0.0
    %68 = vmatpush1.msra.mxu0 0.0
    %69 = vmatprep.subr.mxu0 0.0
    %70 = vmatpush1.msra.mxu0 0.0
    %71 = vmatprep.subr.mxu0 0.0
    %72 = vmatpush1.msra.mxu0 0.0
    %73 = vmatprep.subr.mxu0 0.0
    %74 = vmatpush1.msra.mxu0 0.0
    %75 = vmatprep.subr.mxu0 0.0
    %76 = vmatpush1.msra.mxu0 0.0
    %77 = vmatprep.subr.mxu0 0.0
    %78 = vmatpush1.msra.mxu0 0.0
    %79 = vmatprep.subr.mxu0 0.0
    %80 = vmatpush1.msra.mxu0 0.0
    %81 = vmatprep.subr.mxu0 0.0
    %82 = vmatpush1.msra.mxu0 0.0
    %83 = vmatprep.subr.mxu0 0.0
    %84 = vmatpush1.msra.mxu0 0.0
    %85 = vmatprep.subr.mxu0 0.0
    %86 = vmatpush1.msra.mxu0 0.0
    %87 = vmatprep.subr.mxu0 0.0
    %88 = vmatpush1.msra.mxu0 0.0
    %89 = vmatprep.subr.mxu0 0.0
    %90 = vmatpush1.msra.mxu0 0.0
    %91 = vmatprep.subr.mxu0 0.0
    %92 = vmatpush1.msra.mxu0 0.0
    %93 = vmatprep.subr.mxu0 0.0
    %94 = vmatpush1.msra.mxu0 0.0
    %95 = vmatprep.subr.mxu0 0.0
    %96 = vmatpush1.msra.mxu0 0.0
    %97 = vmatprep.subr.mxu0 0.0
    %98 = vmatpush1.msra.mxu0 0.0
    %99 = vmatprep.subr.mxu0 0.0
    %100 = vmatpush1.msra.mxu0 0.0
    %101 = vmatprep.subr.mxu0 0.0
    %102 = vmatpush1.msra.mxu0 0.0
    %103 = vmatprep.subr.mxu0 0.0
    %104 = vmatpush1.msra.mxu0 0.0
    %105 = vmatprep.subr.mxu0 0.0
    %106 = vmatpush1.msra.mxu0 0.0
    %107 = vmatprep.subr.mxu0 0.0
    %108 = vmatpush1.msra.mxu0 0.0
    %109 = vmatprep.mubr.f32.mxu0 0.0
    %110 = vmatmul.mubr.f32.gmra.mrb[0].mxu0 %v40
    %v111 = vpop.f32.mrb[0].mxu0
    %v112 = vadd.f32 0.0, %v111
    %v113 = vpop.f32.mrb[0].mxu0
    %114 = vmatprep.mubr.f32.mxu0 0.0
    %115 = vmatmul.mubr.f32.gmra.mrb[0].mxu0 %v43
    %v116 = vpop.f32.mrb[0].mxu0
    %v117 = vadd.f32 0.0, %v116
    %v118 = vpop.f32.mrb[0].mxu0
    %119 = vdwg.mxu0
    %v120 = vld [vmem:[%s2] sm:$0xff]
    %v121 = vld [vmem:[%s2 + $0x8] sm:$0xff]
    %123 = vset.pattern.permute.xlu0 0
    %124 = vperm.xlu0 %123, %v120
    %v125 = vpop.permute.xlu0 %124
    %128 = vset.pattern.permute.xlu0 0
    %129 = vperm.xlu0 %128, %v121
    %v130 = vpop.permute.xlu0 %129
    %v132 = vmul.f32 %v112, %v125
    %v133 = vmul.f32 %v117, %v130
    %v134 = vld [vmem:[%s3] sm:$0x1]
    %v136 = vlaneseq
    %v137 = vshrl.u32 %v136, 7
    %v138 = vsub.s32 0, %v137
    %v139 = vrot.slane %v134, %v138
    %v141 = vmul.f32 %v132, %v139
    %v142 = vmul.f32 %v133, %v139
    %143 = vst [vmem:[#allocation5] sm:$0xff] %v141
    %144 = vst [vmem:[#allocation5 + $0x8] sm:$0xff] %v142
    // Predicated region
    $region22: #{tpu_custom_call.1} parent=1 // pred_check
      _
    $region23: #{tpu_custom_call.1} parent=1 // pred_check_branch
      %146 = sbr.rel (0) target = $region25
    $region24: #{tpu_custom_call.1} parent=1 // pred_region
      %s148 = ssub.s32 256, 256
      %149 = vsyncadd [#allocation4], %s148
      %s150 = sshll.u32 [#allocation5], 4
      %s151 = int_to_ptr.vmem [resolvable:$true] %s150
      %156 = dma.vmem_to_hbm [thread:$0]  %s151, 256, %s4, [#allocation4], 128, 128, 8
    $region25: #{tpu_custom_call.1} parent=1 // pred_fallthru
      _
    // Predicated region
    $region26: #{tpu_custom_call.1} parent=1 // pred_check
      _
    $region27: #{tpu_custom_call.1} parent=1 // pred_check_branch
      %158 = sbr.rel (0) target = $region29
    $region28: #{tpu_custom_call.1} parent=1 // pred_region
      %159 = dma.done [#allocation4], 256
    $region29: #{tpu_custom_call.1} parent=1 // pred_fallthru
      _
    %160 = vsyncpa [#allocation3], 1
    %161 = vsyncpa [#allocation4], 1

</llo_original>
